<compile_context>
chip_gen: v6e
topology: v6e:2x2x1
jax: 0.10.0
libtpu: 0.0.40
codegen_flags: <defaults>
</compile_context>

<pallas_src>
from functools import partial

import numpy as np

import jax
import jax.numpy as jnp
from jax.experimental import pallas as pl
from jax.experimental.pallas import tpu as pltpu


# ----------------------------------------------------------------------------
# Primary path: aliased, zero-copy identity (input buffer is donated).
# ----------------------------------------------------------------------------
def _identity_alias_kernel(x_ref, o_ref):
    # Output HBM buffer IS the input buffer (input_output_aliases={0: 0}),
    # so the bytes are already in place.  No DMA, no VMEM tiles, no stores —
    # just pin a fake read/write dependency so the aliased output counts as
    # materialized.
    del x_ref
    pltpu.touch(o_ref)


@partial(jax.jit, donate_argnums=0)
def _identity_zero_copy(x):
    # donate_argnums=0 is what makes the alias real: XLA hands x's HBM buffer
    # to the output instead of inserting a defensive HBM->HBM copy.
    return pl.pallas_call(
        _identity_alias_kernel,
        out_shape=jax.ShapeDtypeStruct(x.shape, x.dtype),
        in_specs=[pl.BlockSpec(memory_space=pl.ANY)],
        out_specs=pl.BlockSpec(memory_space=pl.ANY),
        input_output_aliases={0: 0},
        compiler_params=pltpu.CompilerParams(has_side_effects=True),
    )(x)


# One-time (per shape/dtype) compile-time lowering probe — replaces the old
# runtime try/except, which cannot catch Mosaic lowering errors under jit.
_ZERO_COPY_OK = {}


def _zero_copy_supported(shape, dtype):
    key = (tuple(shape), jnp.dtype(dtype).name)
    ok = _ZERO_COPY_OK.get(key)
    if ok is None:
        try:
            _identity_zero_copy.lower(jax.ShapeDtypeStruct(shape, dtype)).compile()
            ok = True
        except Exception:
            ok = False
        _ZERO_COPY_OK[key] = ok
    return ok


# ----------------------------------------------------------------------------
# Secondary path: lane-dense, tiled copy (distinct output buffer).
# ----------------------------------------------------------------------------
_LANES = 128
_SUBLANES = 8
# 2 MiB per buffer: 2*(in+out) double-buffered tiles = 8 MiB live VMEM, which
# fits every generation's default scoped VMEM limit (16 MiB v5e, 32 MiB
# v6e/v7x) with headroom; copy roofline already saturates at ~1 MiB tiles.
_MAX_TILE_BYTES = 2 * 1024 * 1024
_MIN_TILE_BYTES = 1 * 1024 * 1024


def _identity_copy_kernel(x_ref, o_ref):
    o_ref[...] = x_ref[...]


def _pick_block_rows(rows, row_bytes):
    cap_rows = max(_SUBLANES, _MAX_TILE_BYTES // row_bytes)
    if rows <= cap_rows:
        return rows  # single full-extent block
    cap_rows -= cap_rows % _SUBLANES
    min_rows = max(_SUBLANES, _MIN_TILE_BYTES // row_bytes)
    # Prefer a block_rows that divides rows (no ragged/masked final block), as
    # long as that does not shrink tiles below ~1 MiB.
    for br in range(cap_rows, min_rows - 1, -_SUBLANES):
        if rows % br == 0:
            return br
    return max(cap_rows, _SUBLANES)


def _copy_2d(x2d):
    rows, cols = x2d.shape
    row_bytes = cols * jnp.dtype(x2d.dtype).itemsize
    block_rows = _pick_block_rows(rows, row_bytes)
    grid = (pl.cdiv(rows, block_rows),)
    return pl.pallas_call(
        _identity_copy_kernel,
        out_shape=jax.ShapeDtypeStruct(x2d.shape, x2d.dtype),
        grid=grid,
        in_specs=[pl.BlockSpec((block_rows, cols), lambda r: (r, 0))],
        out_specs=pl.BlockSpec((block_rows, cols), lambda r: (r, 0)),
        compiler_params=pltpu.CompilerParams(
            # Pure copy is HBM-bound, not TC-bound; semantics are only a hint.
            dimension_semantics=("arbitrary",),
        ),
    )(x2d)


def _lane_dense_identity_copy(x):
    orig_shape = x.shape
    n = x.size
    if n == 0:
        return x
    x_flat = x.reshape(n)
    prefix_rows, tail = divmod(n, _LANES)
    parts = []
    if prefix_rows:
        pre = _copy_2d(x_flat[: prefix_rows * _LANES].reshape(prefix_rows, _LANES))
        parts.append(pre.reshape(prefix_rows * _LANES))
    if tail:
        # <128-element remainder: one tiny full-extent block.
        tl = _copy_2d(x_flat[prefix_rows * _LANES :].reshape(1, tail))
        parts.append(tl.reshape(tail))
    y_flat = parts[0] if len(parts) == 1 else jnp.concatenate(parts)
    return y_flat.reshape(orig_shape)


# ----------------------------------------------------------------------------
# Public wrapper (mirrors MyModel(num_classes).forward(x)).
# ----------------------------------------------------------------------------
def my_model_forward(x, num_classes=None, *, copy=False):
    """Pallas implementation of MyModel.forward (identity).

    Default (copy=False): zero-copy — the output aliases x's DONATED device
    buffer, so callers must NOT reuse `x` after this call.  Pass copy=True to
    get a distinct output buffer via the lane-dense tiled copy kernel (input
    preserved).  `num_classes` mirrors the PyTorch constructor but is unused.
    """
    # TODO(synk): the reference module declares num_classes but builds no
    # layers; there is nothing parameterized to implement beyond identity.
    if copy:
        return _lane_dense_identity_copy(x)
    if _zero_copy_supported(x.shape, x.dtype):
        return _identity_zero_copy(x)
    # Compile-time probe failed on this toolchain — use the copy kernel.
    return _lane_dense_identity_copy(x)


if __name__ == "__main__":
    key = jax.random.PRNGKey(0)
    num_classes = 10  # constructor arg; unused by the (empty) forward pass

    # --- Zero-copy path -----------------------------------------------------
    x = jax.random.normal(key, (2, 4, 16, 16), dtype=jnp.float32)
    # The zero-copy path donates x's device buffer to the output, so keep a
    # host copy for the correctness check instead of reusing x afterwards.
    x_host = np.asarray(jax.device_get(x))

    y = my_model_forward(x, num_classes=num_classes)
    y = jax.block_until_ready(y)
    assert y.shape == x_host.shape and y.dtype == x_host.dtype
    assert np.array_equal(np.asarray(jax.device_get(y)), x_host)

    # --- Explicit-copy path (distinct buffer; input preserved) ---------------
    x2 = jax.random.normal(jax.random.PRNGKey(1), (2, 4, 16, 16), dtype=jnp.float32)
    y2 = jax.block_until_ready(my_model_forward(x2, num_classes=num_classes, copy=True))
    assert np.array_equal(np.asarray(jax.device_get(y2)), np.asarray(jax.device_get(x2)))

    # --- Copy path with a size not divisible by 128 (prefix + tail split) ----
    x3 = jax.random.normal(jax.random.PRNGKey(2), (3, 70), dtype=jnp.float32)
    y3 = jax.block_until_ready(my_model_forward(x3, num_classes=num_classes, copy=True))
    assert np.array_equal(np.asarray(jax.device_get(y3)), np.asarray(jax.device_get(x3)))

    print("KERNEL_OK")
</pallas_src>

<mosaic_0001>
module attributes {stable_mosaic.version = 11 : i64} {
  func.func @_identity_copy_kernel(%arg0: i32, %arg1: memref<16x128xf32, #tpu.memory_space<vmem>>, %arg2: memref<16x128xf32, #tpu.memory_space<vmem>>) attributes {dimension_semantics = [#tpu.dimension_semantics<arbitrary>], iteration_bounds = array<i64: 1>, scalar_prefetch = 0 : i64, scratch_operands = 0 : i64, tpu.core_type = #tpu.core_type<tc>, window_params = [{transform_indices = @transform_0, window_bounds = array<i64: 16, 128>}, {transform_indices = @transform_1, window_bounds = array<i64: 16, 128>}]} {
    %c0 = arith.constant 0 : index
    %c0_0 = arith.constant 0 : index
    %0 = vector.load %arg1[%c0, %c0_0] : memref<16x128xf32, #tpu.memory_space<vmem>>, vector<16x128xf32>
    %c0_1 = arith.constant 0 : index
    %c0_2 = arith.constant 0 : index
    %1 = vector.load %arg2[%c0_1, %c0_2] : memref<16x128xf32, #tpu.memory_space<vmem>>, vector<16x128xf32>
    tpu.vector_store %arg2[%c0_1, %c0_2], %0 {strides = array<i32>} : memref<16x128xf32, #tpu.memory_space<vmem>>, vector<16x128xf32>,
    return
  }
  func.func @transform_0(%arg0: i32) -> (i32, i32) {
    %c0_i32 = arith.constant 0 : i32
    %c0_i32_0 = arith.constant 0 : i32
    return %arg0, %c0_i32 : i32, i32
  }
  func.func @transform_1(%arg0: i32) -> (i32, i32) {
    %c0_i32 = arith.constant 0 : i32
    %c0_i32_0 = arith.constant 0 : i32
    return %arg0, %c0_i32 : i32, i32
  }
}

</mosaic_0001>

<llo_original>
// kernel: tpu_custom_call.1
$region0: #{tpu_custom_call.1}
  #allocation0 [shape = 'u32[]', space=smem, size = 0x4, offset = 0x4, fixed_abs, tag = 'smem constant byte address 0x4 - core index']
  #allocation1 [shape = 'u32[144,128]{1,0:T(1,128)}', space=vmem, size = 0x12000, scoped, tag = 'internal scratch']
  %s0 = inlined_call_operand.hbm [shape: f32[16,128], index: 0, kind: input, shape index: {}]
  %s1 = inlined_call_operand.hbm [shape: f32[16,128], index: 1, kind: output, shape index: {}]
  %s2 = sld [smem:[#allocation0]]
  $region18: #{tpu_custom_call.1} parent=0
    _
  %s4 = ssub.s32 1, %s2
  %s5 = scalar_select 0, %s4, %s2
  $region1: #{tpu_custom_call.1} parent=0
    #allocation2 [shape = 'u8[8192]{0}', space=vmem, size = 0x2000, scoped, tag = 'input window, operand 0, single buffered']
    #allocation3 [shape = 's32[1]{0}', space=sflag, size = 0x4, scoped, tag = 'scoped memory for tpu_custom_call.1']
    #allocation4 [shape = 's32[1]{0}', space=sflag, size = 0x4, scoped, tag = 'scoped memory for tpu_custom_call.1']
    #allocation5 [shape = 'u8[8192]{0}', space=vmem, size = 0x2000, scoped, tag = 'output window, operand 0, single buffered']
    %6 = vsyncpa [#allocation3], 0
    %7 = vsyncpa [#allocation4], 0
    // Predicated region
    $region2: #{tpu_custom_call.1} parent=1 // pred_check
      _
    $region3: #{tpu_custom_call.1} parent=1 // pred_check_branch
      %9 = sbr.rel (0) target = $region5
    $region4: #{tpu_custom_call.1} parent=1 // pred_region
      %s11 = ssub.s32 256, 256
      %12 = vsyncadd [#allocation3], %s11
      %s13 = sshll.u32 [#allocation2], 4
      %s14 = int_to_ptr.vmem [resolvable:$true] %s13
      %19 = dma.hbm_to_vmem [thread:$0]  %s0, 256, %s14, [#allocation3], 128, 128, 8
    $region5: #{tpu_custom_call.1} parent=1 // pred_fallthru
      _
    // Predicated region
    $region6: #{tpu_custom_call.1} parent=1 // pred_check
      _
    $region7: #{tpu_custom_call.1} parent=1 // pred_check_branch
      %21 = sbr.rel (0) target = $region9
    $region8: #{tpu_custom_call.1} parent=1 // pred_region
      %22 = dma.done [#allocation3], 256
    $region9: #{tpu_custom_call.1} parent=1 // pred_fallthru
      _
    %v23 = vld [vmem:[#allocation2] sm:$0xff]
    %v24 = vld [vmem:[#allocation2 + $0x8] sm:$0xff]
    %25 = vst [vmem:[#allocation5] sm:$0xff] %v23
    %26 = vst [vmem:[#allocation5 + $0x8] sm:$0xff] %v24
    // Predicated region
    $region10: #{tpu_custom_call.1} parent=1 // pred_check
      _
    $region11: #{tpu_custom_call.1} parent=1 // pred_check_branch
      %28 = sbr.rel (0) target = $region13
    $region12: #{tpu_custom_call.1} parent=1 // pred_region
      %s30 = ssub.s32 256, 256
      %31 = vsyncadd [#allocation4], %s30
      %s32 = sshll.u32 [#allocation5], 4
      %s33 = int_to_ptr.vmem [resolvable:$true] %s32
      %38 = dma.vmem_to_hbm [thread:$0]  %s33, 256, %s1, [#allocation4], 128, 128, 8
    $region13: #{tpu_custom_call.1} parent=1 // pred_fallthru
      _
    // Predicated region
    $region14: #{tpu_custom_call.1} parent=1 // pred_check
      _
    $region15: #{tpu_custom_call.1} parent=1 // pred_check_branch
      %40 = sbr.rel (0) target = $region17
    $region16: #{tpu_custom_call.1} parent=1 // pred_region
      %41 = dma.done [#allocation4], 256
    $region17: #{tpu_custom_call.1} parent=1 // pred_fallthru
      _
    %42 = vsyncpa [#allocation3], 1
    %43 = vsyncpa [#allocation4], 1

</llo_original>
